<compile_context>
chip_gen: v7x
topology: tpu7x:2x2x1
jax: 0.10.0
libtpu: 0.0.40
codegen_flags: <defaults>
</compile_context>

<pallas_src>
import functools

import jax
import jax.numpy as jnp
from jax import lax
from jax.experimental import pallas as pl
from jax.experimental.pallas import tpu as pltpu


_LANES = 128
_FAST_PATH_ELEMS = 1 << 17     # m*n below this -> plain XLA dot
_PACKED_BLOCK_M = 16384        # logical rows per grid step (packed path)
_GENERIC_BLOCK_M = 4096        # logical rows per grid step (fallback path)


# --------------------------------------------------------------------------
# Kernels
# --------------------------------------------------------------------------
def _packed_kernel(xp_ref, w_ref, b_ref, o_ref):
    """Lane-dense packed tile.

    xp_ref: (TMP, 128)     PACK logical rows per packed row (K lanes each)
    w_ref:  (128, PACK*N)  block-diagonal expanded weight (resident)
    b_ref:  (1, PACK*N)    bias tiled PACK times (resident)
    o_ref:  (TMP, PACK*N)  packed feature-last output tile (lane-dense stores)
    """
    acc = jnp.dot(xp_ref[...], w_ref[...], preferred_element_type=jnp.float32)
    o_ref[...] = (acc + b_ref[...]).astype(o_ref.dtype)


def _rowmajor_kernel(x_ref, w_ref, b_ref, o_ref):
    """Fallback tile, feature-last output (no wrapper transpose pass).

    x_ref: (TM, K);  w_ref: (N, K) resident;  b_ref: (1, N);  o_ref: (TM, N)
    """
    acc = lax.dot_general(
        x_ref[...], w_ref[...],
        dimension_numbers=(((1,), (1,)), ((), ())),
        preferred_element_type=jnp.float32)
    o_ref[...] = (acc + b_ref[...]).astype(o_ref.dtype)


# --------------------------------------------------------------------------
# Wrappers
# --------------------------------------------------------------------------
def _packed_tile_rows(m_packed, block_rows):
    """Tile size in packed rows; keep >=2 grid steps for v7x when worthwhile."""
    if m_packed > block_rows:
        return block_rows
    half = ((m_packed + 1) // 2 + 7) // 8 * 8   # 8-aligned half
    if m_packed >= 128 and half < m_packed:     # >=4096 logical rows: split for 2 TCs
        return half
    return m_packed


def _quantile_expansion_packed(x2d, weight, bias, out_dtype, block_m):
    m, k = x2d.shape
    n = weight.shape[0]
    pack = _LANES // k
    m_packed = m // pack

    # Free reshape of the contiguous (m, k) input to lane-dense (m/pack, 128):
    #   xp[r, k*j + kk] == x[pack*r + j, kk]
    xp = x2d.reshape(m_packed, _LANES)

    # Block-diagonal expanded weight: w_big[k*j + kk, j*n + nn] = weight[nn, kk]
    eye = jnp.eye(pack, dtype=jnp.float32)
    w_big = jnp.einsum("jp,kn->jkpn", eye, weight.T.astype(jnp.float32))
    w_big = w_big.reshape(pack * k, pack * n)                       # (128, pack*n)
    b_big = jnp.tile(bias.astype(jnp.float32), (pack,)).reshape(1, pack * n)

    block_rows = max((block_m // pack) // 8 * 8, 8)
    tmp = _packed_tile_rows(m_packed, block_rows)
    grid = (pl.cdiv(m_packed, tmp),)

    out_p = pl.pallas_call(
        _packed_kernel,
        out_shape=jax.ShapeDtypeStruct((m_packed, pack * n), out_dtype),
        grid=grid,
        in_specs=[
            pl.BlockSpec((tmp, _LANES), lambda i: (i, 0)),          # x tile
            pl.BlockSpec((pack * k, pack * n), lambda i: (0, 0)),   # weight resident
            pl.BlockSpec((1, pack * n), lambda i: (0, 0)),          # bias resident
        ],
        out_specs=pl.BlockSpec((tmp, pack * n), lambda i: (i, 0)),  # lane-dense
        compiler_params=pltpu.CompilerParams(
            dimension_semantics=("parallel",)),
        cost_estimate=pl.CostEstimate(
            flops=2 * m_packed * _LANES * pack * n,
            transcendentals=0,
            bytes_accessed=4 * (m * k + pack * k * pack * n + m * n)),
    )(xp, w_big, b_big)

    # Free reshape back: out_p[r, j*n + nn] is exactly row-major (m, n).
    return out_p.reshape(m, n)


def _quantile_expansion_generic(x2d, weight, bias, out_dtype, block_m):
    m, k = x2d.shape
    n = weight.shape[0]
    b2d = bias.astype(jnp.float32).reshape(1, n)

    tm = m if m <= block_m else max((block_m // 8) * 8, 8)
    grid = (pl.cdiv(m, tm),)

    return pl.pallas_call(
        _rowmajor_kernel,
        out_shape=jax.ShapeDtypeStruct((m, n), out_dtype),
        grid=grid,
        in_specs=[
            pl.BlockSpec((tm, k), lambda i: (i, 0)),   # x tile (lane-padded)
            pl.BlockSpec((n, k), lambda i: (0, 0)),    # weight resident
            pl.BlockSpec((1, n), lambda i: (0, 0)),    # bias resident
        ],
        out_specs=pl.BlockSpec((tm, n), lambda i: (i, 0)),   # feature-last
        compiler_params=pltpu.CompilerParams(
            dimension_semantics=("parallel",)),
        cost_estimate=pl.CostEstimate(
            flops=2 * m * k * n, transcendentals=0,
            bytes_accessed=4 * (m * k + k * n + m * n)),
    )(x2d, weight, b2d)


@functools.partial(jax.jit,
                   static_argnames=("out_dtype", "block_m", "force_pallas"))
def quantile_expansion(base_output, weight, bias, *, out_dtype=None,
                       block_m=None, force_pallas=False):
    """Pallas implementation of base_output @ weight.T + bias (nn.Linear)."""
    *lead, k = base_output.shape
    n = weight.shape[0]
    m = 1
    for d in lead:
        m *= d
    dtype = out_dtype if out_dtype is not None else base_output.dtype

    x2d = base_output.reshape(m, k)

    # Small-problem fast path: a fused XLA dot beats pallas_call launch cost.
    if not force_pallas and m * n < _FAST_PATH_ELEMS:
        out = x2d @ weight.T.astype(x2d.dtype) + bias.astype(x2d.dtype)
        return out.astype(dtype).reshape(*lead, n)

    if _LANES % k == 0 and m % (_LANES // k) == 0:
        bm = block_m if block_m is not None else _PACKED_BLOCK_M
        out2d = _quantile_expansion_packed(x2d, weight, bias, dtype, bm)
    else:
        # TODO(synk): ragged M / K not dividing 128 uses the lane-padded
        # fallback (masked N-lane stores); producers emitting M % (128//K) == 0
        # get the fully lane-dense packed kernel.
        bm = block_m if block_m is not None else _GENERIC_BLOCK_M
        out2d = _quantile_expansion_generic(x2d, weight, bias, dtype, bm)
    return out2d.reshape(*lead, n)


def quantile_extension_forward(base_output, weight, bias):
    """Mirrors QuantileExtension.forward: handles tensor or dict inputs."""
    if isinstance(base_output, dict):
        out = dict(base_output)
        if "prediction" in out:
            out["prediction"] = quantile_expansion(out["prediction"], weight, bias)
            if out.get("predictions_samples") is not None:
                out["predictions_samples"] = quantile_expansion(
                    out["predictions_samples"], weight, bias)
        return out
    return quantile_expansion(base_output, weight, bias)


def init_linear_params(key, in_features, out_features, dtype=jnp.float32):
    """nn.Linear default init (uniform +/- 1/sqrt(in_features))."""
    kw, kb = jax.random.split(key)
    bound = 1.0 / jnp.sqrt(jnp.float32(in_features))
    weight = jax.random.uniform(
        kw, (out_features, in_features), dtype=dtype, minval=-bound, maxval=bound)
    bias = jax.random.uniform(
        kb, (out_features,), dtype=dtype, minval=-bound, maxval=bound)
    return weight, bias


if __name__ == "__main__":
    key = jax.random.PRNGKey(0)
    k_x1, k_x2, k_x3, k_p = jax.random.split(key, 4)

    c_out = 4
    quantiles = [0.1, 0.5, 0.9]
    n_q = len(quantiles)
    weight, bias = init_linear_params(k_p, c_out, c_out * n_q)

    def ref(x):
        return x @ weight.T + bias

    # 1) Packed lane-dense kernel (M % 32 == 0): batch=2, seq=16, c_out=4.
    x1 = jax.random.normal(k_x1, (2, 16, c_out), dtype=jnp.float32)
    o1 = jax.block_until_ready(
        quantile_expansion(x1, weight, bias, force_pallas=True))
    assert o1.shape == (2, 16, c_out * n_q)
    assert jnp.allclose(o1, ref(x1), atol=1e-4, rtol=1e-4)

    # 2) Packed kernel, multi-step grid with a ragged tail block:
    #    M = 2080 rows -> 65 packed rows; block_m=1024 -> 32-row tiles, grid=3.
    x2 = jax.random.normal(k_x2, (2, 1040, c_out), dtype=jnp.float32)
    o2 = jax.block_until_ready(
        quantile_expansion(x2, weight, bias, block_m=1024, force_pallas=True))
    assert jnp.allclose(o2, ref(x2), atol=1e-4, rtol=1e-4)

    # 3) Fallback kernel for ragged M (M = 22, not a multiple of 32).
    x3 = jax.random.normal(k_x3, (2, 11, c_out), dtype=jnp.float32)
    o3 = jax.block_until_ready(
        quantile_expansion(x3, weight, bias, force_pallas=True))
    assert jnp.allclose(o3, ref(x3), atol=1e-4, rtol=1e-4)

    # 4) Module-style dict forward (takes the small-problem fast path).
    d = quantile_extension_forward(
        {"prediction": x1, "predictions_samples": None}, weight, bias)
    d_pred = jax.block_until_ready(d["prediction"])
    assert jnp.allclose(d_pred, ref(x1), atol=1e-4, rtol=1e-4)

    print("KERNEL_OK")
</pallas_src>

<mosaic_0001>
module attributes {stable_mosaic.version = 11 : i64} {
  func.func @_packed_kernel(%arg0: i32, %arg1: memref<1x128xf32, #tpu.memory_space<vmem>>, %arg2: memref<128x384xf32, #tpu.memory_space<vmem>>, %arg3: memref<1x384xf32, #tpu.memory_space<vmem>>, %arg4: memref<1x384xf32, #tpu.memory_space<vmem>>) attributes {dimension_semantics = [#tpu.dimension_semantics<parallel>], iteration_bounds = array<i64: 1>, scalar_prefetch = 0 : i64, scratch_operands = 0 : i64, tpu.core_type = #tpu.core_type<tc>, window_params = [{transform_indices = @transform_0, window_bounds = array<i64: 1, 128>}, {pipeline_mode = #tpu.pipeline_mode<synchronous>, transform_indices = @transform_1, window_bounds = array<i64: 128, 384>}, {pipeline_mode = #tpu.pipeline_mode<synchronous>, transform_indices = @transform_2, window_bounds = array<i64: 1, 384>}, {transform_indices = @transform_3, window_bounds = array<i64: 1, 384>}]} {
    %c0 = arith.constant 0 : index
    %c0_0 = arith.constant 0 : index
    %0 = vector.load %arg1[%c0, %c0_0] : memref<1x128xf32, #tpu.memory_space<vmem>>, vector<1x128xf32>
    %c0_1 = arith.constant 0 : index
    %c0_2 = arith.constant 0 : index
    %1 = vector.load %arg2[%c0_1, %c0_2] : memref<128x384xf32, #tpu.memory_space<vmem>>, vector<128x384xf32>
    %cst = arith.constant dense<0.000000e+00> : vector<1x384xf32>
    %2 = tpu.matmul %0, %1, %cst {dimension_numbers = #tpu.dot_dimension_numbers<[1], [0], [0], [1], [0, 0, 1, 1], [], []>} : vector<1x128xf32>, vector<128x384xf32>, vector<1x384xf32> -> vector<1x384xf32>
    %c0_3 = arith.constant 0 : index
    %c0_4 = arith.constant 0 : index
    %3 = vector.load %arg3[%c0_3, %c0_4] : memref<1x384xf32, #tpu.memory_space<vmem>>, vector<1x384xf32>
    %4 = arith.addf %2, %3 : vector<1x384xf32>
    %c0_5 = arith.constant 0 : index
    %c0_6 = arith.constant 0 : index
    %5 = vector.load %arg4[%c0_5, %c0_6] : memref<1x384xf32, #tpu.memory_space<vmem>>, vector<1x384xf32>
    tpu.vector_store %arg4[%c0_5, %c0_6], %4 {strides = array<i32>} : memref<1x384xf32, #tpu.memory_space<vmem>>, vector<1x384xf32>,
    return
  }
  func.func @transform_0(%arg0: i32) -> (i32, i32) {
    %c0_i32 = arith.constant 0 : i32
    %c0_i32_0 = arith.constant 0 : i32
    return %arg0, %c0_i32 : i32, i32
  }
  func.func @transform_1(%arg0: i32) -> (i32, i32) {
    %c0_i32 = arith.constant 0 : i32
    %c0_i32_0 = arith.constant 0 : i32
    %c0_i32_1 = arith.constant 0 : i32
    return %c0_i32, %c0_i32_0 : i32, i32
  }
  func.func @transform_2(%arg0: i32) -> (i32, i32) {
    %c0_i32 = arith.constant 0 : i32
    %c0_i32_0 = arith.constant 0 : i32
    %c0_i32_1 = arith.constant 0 : i32
    return %c0_i32, %c0_i32_0 : i32, i32
  }
  func.func @transform_3(%arg0: i32) -> (i32, i32) {
    %c0_i32 = arith.constant 0 : i32
    %c0_i32_0 = arith.constant 0 : i32
    return %arg0, %c0_i32 : i32, i32
  }
}

</mosaic_0001>

<llo_original>
// kernel: tile.8
$region0: #{tile.8}
  #allocation0 [shape = 's32[1]{0}', space=sflag, size = 0x4, scoped, tag = 'scoped memory for tile.8']
  %s0 = inlined_call_operand.vmem [shape: f32[12], index: 0, kind: input, shape index: {}]
  %s1 = inlined_call_operand.vmem [shape: f32[32,12], index: 1, kind: output, shape index: {}]
  // Predicated region
  $region2: #{tile.8} parent=0 // pred_check
    _
  $region3: #{tile.8} parent=0 // pred_check_branch
    %3 = sbr.rel (0) target = $region5
  $region4: #{tile.8} parent=0 // pred_region
    _
  $region5: #{tile.8} parent=0 // pred_fallthru
    _
  %v4 = vld [vmem:[%s0] ss:$0 sm:$0xff]
  %5 = vst [vmem:[%s1] sm:$0xff] %v4
  %s6 = scalar_lea.vmem %s1, 8
  %7 = vst [vmem:[%s6] sm:$0xff] %v4
  %s8 = scalar_lea.vmem %s1, 16
  %9 = vst [vmem:[%s8] sm:$0xff] %v4
  %s10 = scalar_lea.vmem %s1, 24
  %11 = vst [vmem:[%s10] sm:$0xff] %v4

// kernel: tile.9
$region0: #{tile.9}
  %s0 = inlined_call_operand.vmem [shape: f32[32,12], index: 0, kind: input, shape index: {}]
  %s1 = inlined_call_operand.vmem [shape: f32[1,384], index: 1, kind: output, shape index: {}]
  $region1: #{tile.9} parent=0
    #allocation0 [shape = 'u8[12288]{0}', space=vmem, size = 0x3000, scoped, tag = 'scoped mem for output reshape']
    %v2 = vld [vmem:[%s0] sm:$0x1]
    %vm3 = vcmask 97280
    %4 = vst.msk [vmem:[#allocation0] sm:$0x1] %vm3, %v2
    %s5 = scalar_lea.vmem %s0, 21
    %v6 = vld [vmem:[%s5] sm:$0x1]
    %s7 = scalar_lea.vmem %s0, 21
    %v8 = vld [vmem:[%s7] sm:$0x1]
    %vm9 = vcmask 31744
    %v10 = vsel %vm9, %v8, %v6
    %11 = vrot.lane.b32.xlu0 %v10, 124
    %v12 = vpop.permute.xlu0 %11
    %vm13 = vcmask 64512
    %s14 = scalar_lea.vmem [#allocation0], 16
    %15 = vst.msk [vmem:[%s14] sm:$0x1] %vm13, %v12
    %vm16 = vcmask 1048544
    %s17 = scalar_lea.vmem [#allocation0], 8
    %18 = vst.msk [vmem:[%s17] sm:$0x1] %vm16, %v12
    %s19 = scalar_lea.vmem %s0, 10
    %v20 = vld [vmem:[%s19] sm:$0x1]
    %s21 = scalar_lea.vmem %s0, 10
    %v22 = vld [vmem:[%s21] sm:$0x1]
    %vm23 = vcmask 64512
    %v24 = vsel %vm23, %v22, %v20
    %25 = vrot.lane.b32.xlu0 %v24, 120
    %v26 = vpop.permute.xlu0 %25
    %vm27 = vcmask 31744
    %s28 = scalar_lea.vmem [#allocation0], 8
    %29 = vst.msk [vmem:[%s28] sm:$0x1] %vm27, %v26
    %vm30 = vcmask 1048512
    %31 = vst.msk [vmem:[#allocation0] sm:$0x1] %vm30, %v26
    %s32 = scalar_lea.vmem %s0, 31
    %v33 = vld [vmem:[%s32] sm:$0x1]
    %34 = vrot.lane.b32.xlu0 %v33, 116
    %v35 = vpop.permute.xlu0 %34
    %vm36 = vcmask 1048480
    %s37 = scalar_lea.vmem [#allocation0], 16
    %38 = vst.msk [vmem:[%s37] sm:$0x1] %vm36, %v35
    %s39 = scalar_lea.vmem %s0, 20
    %v40 = vld [vmem:[%s39] sm:$0x1]
    %41 = vrot.lane.b32.xlu0 %v40, 112
    %v42 = vpop.permute.xlu0 %41
    %vm43 = vcmask 1015680
    %s44 = scalar_lea.vmem [#allocation0], 8
    %45 = vst.msk [vmem:[%s44] sm:$0x1] %vm43, %v42
    %s46 = scalar_lea.vmem %s0, 9
    %v47 = vld [vmem:[%s46] sm:$0x1]
    %48 = vrot.lane.b32.xlu0 %v47, 108
    %v49 = vpop.permute.xlu0 %48
    %vm50 = vcmask 982880
    %51 = vst.msk [vmem:[#allocation0] sm:$0x1] %vm50, %v49
    %s52 = scalar_lea.vmem %s0, 30
    %v53 = vld [vmem:[%s52] sm:$0x1]
    %54 = vrot.lane.b32.xlu0 %v53, 104
    %v55 = vpop.permute.xlu0 %54
    %vm56 = vcmask 950080
    %s57 = scalar_lea.vmem [#allocation0], 16
    %58 = vst.msk [vmem:[%s57] sm:$0x1] %vm56, %v55
    %s59 = scalar_lea.vmem %s0, 19
    %v60 = vld [vmem:[%s59] sm:$0x1]
    %61 = vrot.lane.b32.xlu0 %v60, 100
    %v62 = vpop.permute.xlu0 %61
    %vm63 = vcmask 917280
    %s64 = scalar_lea.vmem [#allocation0], 8
    %65 = vst.msk [vmem:[%s64] sm:$0x1] %vm63, %v62
    %s66 = scalar_lea.vmem %s0, 8
    %v67 = vld [vmem:[%s66] sm:$0x1]
    %68 = vrot.lane.b32.xlu0 %v67, 96
    %v69 = vpop.permute.xlu0 %68
    %vm70 = vcmask 884480
    %71 = vst.msk [vmem:[#allocation0] sm:$0x1] %vm70, %v69
    %s72 = scalar_lea.vmem %s0, 29
    %v73 = vld [vmem:[%s72] sm:$0x1]
    %74 = vrot.lane.b32.xlu0 %v73, 92
    %v75 = vpop.permute.xlu0 %74
    %vm76 = vcmask 851680
    %s77 = scalar_lea.vmem [#allocation0], 16
    %78 = vst.msk [vmem:[%s77] sm:$0x1] %vm76, %v75
    %s79 = scalar_lea.vmem %s0, 18
    %v80 = vld [vmem:[%s79] sm:$0x1]
    %81 = vrot.lane.b32.xlu0 %v80, 88
    %v82 = vpop.permute.xlu0 %81
    %vm83 = vcmask 818880
    %s84 = scalar_lea.vmem [#allocation0], 8
    %85 = vst.msk [vmem:[%s84] sm:$0x1] %vm83, %v82
    %s86 = scalar_lea.vmem %s0, 7
    %v87 = vld [vmem:[%s86] sm:$0x1]
    %88 = vrot.lane.b32.xlu0 %v87, 84
    %v89 = vpop.permute.xlu0 %88
    %vm90 = vcmask 786080
    %91 = vst.msk [vmem:[#allocation0] sm:$0x1] %vm90, %v89
    %s92 = scalar_lea.vmem %s0, 28
    %v93 = vld [vmem:[%s92] sm:$0x1]
    %94 = vrot.lane.b32.xlu0 %v93, 80
    %v95 = vpop.permute.xlu0 %94
    %vm96 = vcmask 753280
    %s97 = scalar_lea.vmem [#allocation0], 16
    %98 = vst.msk [vmem:[%s97] sm:$0x1] %vm96, %v95
    %s99 = scalar_lea.vmem %s0, 17
    %v100 = vld [vmem:[%s99] sm:$0x1]
    %101 = vrot.lane.b32.xlu0 %v100, 76
    %v102 = vpop.permute.xlu0 %101
    %vm103 = vcmask 720480
    %s104 = scalar_lea.vmem [#allocation0], 8
    %105 = vst.msk [vmem:[%s104] sm:$0x1] %vm103, %v102
    %s106 = scalar_lea.vmem %s0, 6
    %v107 = vld [vmem:[%s106] sm:$0x1]
    %108 = vrot.lane.b32.xlu0 %v107, 72
    %v109 = vpop.permute.xlu0 %108
    %vm110 = vcmask 687680
    %111 = vst.msk [vmem:[#allocation0] sm:$0x1] %vm110, %v109
    %s112 = scalar_lea.vmem %s0, 27
    %v113 = vld [vmem:[%s112] sm:$0x1]
    %114 = vrot.lane.b32.xlu0 %v113, 68
    %v115 = vpop.permute.xlu0 %114
    %vm116 = vcmask 654880
    %s117 = scalar_lea.vmem [#allocation0], 16
    %118 = vst.msk [vmem:[%s117] sm:$0x1] %vm116, %v115
    %s119 = scalar_lea.vmem %s0, 16
    %v120 = vld [vmem:[%s119] sm:$0x1]
    %121 = vrot.lane.b32.xlu0 %v120, 64
    %v122 = vpop.permute.xlu0 %121
    %vm123 = vcmask 622080
    %s124 = scalar_lea.vmem [#allocation0], 8
    %125 = vst.msk [vmem:[%s124] sm:$0x1] %vm123, %v122
    %s126 = scalar_lea.vmem %s0, 5
    %v127 = vld [vmem:[%s126] sm:$0x1]
    %128 = vrot.lane.b32.xlu0 %v127, 60
    %v129 = vpop.permute.xlu0 %128
    %vm130 = vcmask 589280
    %131 = vst.msk [vmem:[#allocation0] sm:$0x1] %vm130, %v129
    %s132 = scalar_lea.vmem %s0, 26
    %v133 = vld [vmem:[%s132] sm:$0x1]
    %134 = vrot.lane.b32.xlu0 %v133, 56
    %v135 = vpop.permute.xlu0 %134
    %vm136 = vcmask 556480
    %s137 = scalar_lea.vmem [#allocation0], 16
    %138 = vst.msk [vmem:[%s137] sm:$0x1] %vm136, %v135
    %s139 = scalar_lea.vmem %s0, 15
    %v140 = vld [vmem:[%s139] sm:$0x1]
    %141 = vrot.lane.b32.xlu0 %v140, 52
    %v142 = vpop.permute.xlu0 %141
    %vm143 = vcmask 523680
    %s144 = scalar_lea.vmem [#allocation0], 8
    %145 = vst.msk [vmem:[%s144] sm:$0x1] %vm143, %v142
    %s146 = scalar_lea.vmem %s0, 4
    %v147 = vld [vmem:[%s146] sm:$0x1]
    %148 = vrot.lane.b32.xlu0 %v147, 48
    %v149 = vpop.permute.xlu0 %148
    %vm150 = vcmask 490880
    %151 = vst.msk [vmem:[#allocation0] sm:$0x1] %vm150, %v149
    %s152 = scalar_lea.vmem %s0, 25
    %v153 = vld [vmem:[%s152] sm:$0x1]
    %154 = vrot.lane.b32.xlu0 %v153, 44
    %v155 = vpop.permute.xlu0 %154
    %vm156 = vcmask 458080
    %s157 = scalar_lea.vmem [#allocation0], 16
    %158 = vst.msk [vmem:[%s157] sm:$0x1] %vm156, %v155
    %s159 = scalar_lea.vmem %s0, 14
    %v160 = vld [vmem:[%s159] sm:$0x1]
    %161 = vrot.lane.b32.xlu0 %v160, 40
    %v162 = vpop.permute.xlu0 %161
    %vm163 = vcmask 425280
    %s164 = scalar_lea.vmem [#allocation0], 8
    %165 = vst.msk [vmem:[%s164] sm:$0x1] %vm163, %v162
    %s166 = scalar_lea.vmem %s0, 3
    %v167 = vld [vmem:[%s166] sm:$0x1]
    %168 = vrot.lane.b32.xlu0 %v167, 36
    %v169 = vpop.permute.xlu0 %168
    %vm170 = vcmask 392480
    %171 = vst.msk [vmem:[#allocation0] sm:$0x1] %vm170, %v169
    %s172 = scalar_lea.vmem %s0, 24
    %v173 = vld [vmem:[%s172] sm:$0x1]
    %174 = vrot.lane.b32.xlu0 %v173, 32
    %v175 = vpop.permute.xlu0 %174
    %vm176 = vcmask 359680
    %s177 = scalar_lea.vmem [#allocation0], 16
    %178 = vst.msk [vmem:[%s177] sm:$0x1] %vm176, %v175
    %s179 = scalar_lea.vmem %s0, 13
    %v180 = vld [vmem:[%s179] sm:$0x1]
    %181 = vrot.lane.b32.xlu0 %v180, 28
    %v182 = vpop.permute.xlu0 %181
    %vm183 = vcmask 326880
    %s184 = scalar_lea.vmem [#allocation0], 8
    %185 = vst.msk [vmem:[%s184] sm:$0x1] %vm183, %v182
    %s186 = scalar_lea.vmem %s0, 2
    %v187 = vld [vmem:[%s186] sm:$0x1]
    %188 = vrot.lane.b32.xlu0 %v187, 24
    %v189 = vpop.permute.xlu0 %188
    %vm190 = vcmask 294080
    %191 = vst.msk [vmem:[#allocation0] sm:$0x1] %vm190, %v189
    %s192 = scalar_lea.vmem %s0, 23
    %v193 = vld [vmem:[%s192] sm:$0x1]
    %194 = vrot.lane.b32.xlu0 %v193, 20
    %v195 = vpop.permute.xlu0 %194
    %vm196 = vcmask 261280
    %s197 = scalar_lea.vmem [#allocation0], 16
    %198 = vst.msk [vmem:[%s197] sm:$0x1] %vm196, %v195
    %s199 = scalar_lea.vmem %s0, 12
    %v200 = vld [vmem:[%s199] sm:$0x1]
    %201 = vrot.lane.b32.xlu0 %v200, 16
    %v202 = vpop.permute.xlu0 %201
    %vm203 = vcmask 228480
    %s204 = scalar_lea.vmem [#allocation0], 8
    %205 = vst.msk [vmem:[%s204] sm:$0x1] %vm203, %v202
    %s206 = scalar_lea.vmem %s0, 1
    %v207 = vld [vmem:[%s206] sm:$0x1]
    %208 = vrot.lane.b32.xlu0 %v207, 12
    %v209 = vpop.permute.xlu0 %208
    %vm210 = vcmask 195680
    %211 = vst.msk [vmem:[#allocation0] sm:$0x1] %vm210, %v209
    %s212 = scalar_lea.vmem %s0, 22
    %v213 = vld [vmem:[%s212] sm:$0x1]
    %214 = vrot.lane.b32.xlu0 %v213, 8
    %v215 = vpop.permute.xlu0 %214
    %vm216 = vcmask 162880
    %s217 = scalar_lea.vmem [#allocation0], 16
    %218 = vst.msk [vmem:[%s217] sm:$0x1] %vm216, %v215
    %s219 = scalar_lea.vmem %s0, 11
    %v220 = vld [vmem:[%s219] sm:$0x1]
    %221 = vrot.lane.b32.xlu0 %v220, 4
    %v222 = vpop.permute.xlu0 %221
    %vm223 = vcmask 130080
    %s224 = scalar_lea.vmem [#allocation0], 8
    %225 = vst.msk [vmem:[%s224] sm:$0x1] %vm223, %v222
    %s227 = sshllo.u32 0, 1
    %v229 = vld [vmem:[#allocation0] sm:%s227]
    %s230 = sshllo.u32 0, 1
    %231 = vst [vmem:[%s1] sm:%s230] %v229
    %s232 = scalar_lea.vmem [#allocation0], 8
    %v233 = vld [vmem:[%s232] sm:%s227]
    %s234 = sshllo.u32 0, 1
    %s235 = scalar_lea.vmem %s1, 1
    %236 = vst [vmem:[%s235] sm:%s234] %v233
    %s237 = scalar_lea.vmem [#allocation0], 16
    %v238 = vld [vmem:[%s237] sm:%s227]
    %s239 = sshllo.u32 0, 1
    %s240 = smul.addr 1, 2
    %s241 = scalar_lea.vmem %s1, %s240
    %242 = vst [vmem:[%s241] sm:%s239] %v238

// kernel: quantile_expansion.1
$region0: #{quantile_expansion.1}
  #allocation0 [shape = 'u32[]', space=smem, size = 0x4, offset = 0x4, fixed_abs, tag = 'smem constant byte address 0x4 - core index']
  #allocation1 [shape = 'u32[144,128]{1,0:T(1,128)}', space=vmem, size = 0x12000, scoped, tag = 'internal scratch']
  %s0 = inlined_call_operand.vmem [shape: f32[1,128], index: 0, kind: input, shape index: {}]
  %s1 = inlined_call_operand.vmem [shape: f32[128,384], index: 1, kind: input, shape index: {}]
  %s2 = inlined_call_operand.vmem [shape: f32[1,384], index: 2, kind: input, shape index: {}]
  %s3 = inlined_call_operand.vmem [shape: f32[1,384], index: 3, kind: output, shape index: {}]
  %s4 = sld [smem:[#allocation0]]
  $region22: #{quantile_expansion.1} parent=0
    _
  %s6 = ssub.s32 1, %s4
  %s7 = scalar_select 0, %s6, %s4
  // Predicated region
  $region2: #{quantile_expansion.1} parent=0 // pred_check
    _
  $region3: #{quantile_expansion.1} parent=0 // pred_check_branch
    %9 = sbr.rel (0) target = $region5
  $region4: #{quantile_expansion.1} parent=0 // pred_region
    _
  $region5: #{quantile_expansion.1} parent=0 // pred_fallthru
    _
  // Predicated region
  $region6: #{quantile_expansion.1} parent=0 // pred_check
    _
  $region7: #{quantile_expansion.1} parent=0 // pred_check_branch
    %11 = sbr.rel (0) target = $region9
  $region8: #{quantile_expansion.1} parent=0 // pred_region
    _
  $region9: #{quantile_expansion.1} parent=0 // pred_fallthru
    _
  // Predicated region
  $region10: #{quantile_expansion.1} parent=0 // pred_check
    _
  $region11: #{quantile_expansion.1} parent=0 // pred_check_branch
    %13 = sbr.rel (0) target = $region13
  $region12: #{quantile_expansion.1} parent=0 // pred_region
    _
  $region13: #{quantile_expansion.1} parent=0 // pred_fallthru
    _
  %v14 = vld [vmem:[%s0] sm:$0x1]
  %v15 = vld [vmem:[%s1] sm:$0xff]
  %v16 = vld [vmem:[%s1 + $0x8] sm:$0xff]
  %v17 = vld [vmem:[%s1 + $0x10] sm:$0xff]
  %v18 = vld [vmem:[%s1 + $0x18] sm:$0xff]
  %v19 = vld [vmem:[%s1 + $0x20] sm:$0xff]
  %v20 = vld [vmem:[%s1 + $0x28] sm:$0xff]
  %v21 = vld [vmem:[%s1 + $0x30] sm:$0xff]
  %v22 = vld [vmem:[%s1 + $0x38] sm:$0xff]
  %v23 = vld [vmem:[%s1 + $0x40] sm:$0xff]
  %v24 = vld [vmem:[%s1 + $0x48] sm:$0xff]
  %v25 = vld [vmem:[%s1 + $0x50] sm:$0xff]
  %v26 = vld [vmem:[%s1 + $0x58] sm:$0xff]
  %v27 = vld [vmem:[%s1 + $0x60] sm:$0xff]
  %v28 = vld [vmem:[%s1 + $0x68] sm:$0xff]
  %v29 = vld [vmem:[%s1 + $0x70] sm:$0xff]
  %v30 = vld [vmem:[%s1 + $0x78] sm:$0xff]
  %v31 = vld [vmem:[%s1 + $0x80] sm:$0xff]
  %v32 = vld [vmem:[%s1 + $0x88] sm:$0xff]
  %v33 = vld [vmem:[%s1 + $0x90] sm:$0xff]
  %v34 = vld [vmem:[%s1 + $0x98] sm:$0xff]
  %v35 = vld [vmem:[%s1 + $0xa0] sm:$0xff]
  %v36 = vld [vmem:[%s1 + $0xa8] sm:$0xff]
  %v37 = vld [vmem:[%s1 + $0xb0] sm:$0xff]
  %v38 = vld [vmem:[%s1 + $0xb8] sm:$0xff]
  %v39 = vld [vmem:[%s1 + $0xc0] sm:$0xff]
  %v40 = vld [vmem:[%s1 + $0xc8] sm:$0xff]
  %v41 = vld [vmem:[%s1 + $0xd0] sm:$0xff]
  %v42 = vld [vmem:[%s1 + $0xd8] sm:$0xff]
  %v43 = vld [vmem:[%s1 + $0xe0] sm:$0xff]
  %v44 = vld [vmem:[%s1 + $0xe8] sm:$0xff]
  %v45 = vld [vmem:[%s1 + $0xf0] sm:$0xff]
  %v46 = vld [vmem:[%s1 + $0xf8] sm:$0xff]
  %v47 = vld [vmem:[%s1 + $0x100] sm:$0xff]
  %v48 = vld [vmem:[%s1 + $0x108] sm:$0xff]
  %v49 = vld [vmem:[%s1 + $0x110] sm:$0xff]
  %v50 = vld [vmem:[%s1 + $0x118] sm:$0xff]
  %v51 = vld [vmem:[%s1 + $0x120] sm:$0xff]
  %v52 = vld [vmem:[%s1 + $0x128] sm:$0xff]
  %v53 = vld [vmem:[%s1 + $0x130] sm:$0xff]
  %v54 = vld [vmem:[%s1 + $0x138] sm:$0xff]
  %v55 = vld [vmem:[%s1 + $0x140] sm:$0xff]
  %v56 = vld [vmem:[%s1 + $0x148] sm:$0xff]
  %v57 = vld [vmem:[%s1 + $0x150] sm:$0xff]
  %v58 = vld [vmem:[%s1 + $0x158] sm:$0xff]
  %v59 = vld [vmem:[%s1 + $0x160] sm:$0xff]
  %v60 = vld [vmem:[%s1 + $0x168] sm:$0xff]
  %v61 = vld [vmem:[%s1 + $0x170] sm:$0xff]
  %v62 = vld [vmem:[%s1 + $0x178] sm:$0xff]
  %v63 = vld [vmem:[%s2] sm:$0x7]
  %v65 = vlaneseq
  %v66 = vshrl.u32 %v65, 7
  %v67 = vsub.s32 0, %v66
  %v68 = vrot.slane %v63, %v67
  %v69 = vlaneseq
  %v70 = vshrl.u32 %v69, 7
  %v71 = vsub.s32 1, %v70
  %v72 = vrot.slane %v63, %v71
  %v73 = vlaneseq
  %v74 = vshrl.u32 %v73, 7
  %v75 = vsub.s32 2, %v74
  %v76 = vrot.slane %v63, %v75
  %80 = vmatprep.subr.mxu0 %v16
  %81 = vmatpush1.msra.mxu0 %v15
  %82 = vmatprep.subr.mxu0 %v19
  %83 = vmatpush1.msra.mxu0 %v18
  %84 = vmatprep.subr.mxu0 %v22
  %85 = vmatpush1.msra.mxu0 %v21
  %86 = vmatprep.subr.mxu0 %v25
  %87 = vmatpush1.msra.mxu0 %v24
  %88 = vmatprep.subr.mxu0 %v28
  %89 = vmatpush1.msra.mxu0 %v27
  %90 = vmatprep.subr.mxu0 %v31
  %91 = vmatpush1.msra.mxu0 %v30
  %92 = vmatprep.subr.mxu0 %v34
  %93 = vmatpush1.msra.mxu0 %v33
  %94 = vmatprep.subr.mxu0 %v37
  %95 = vmatpush1.msra.mxu0 %v36
  %96 = vmatprep.subr.mxu0 %v40
  %97 = vmatpush1.msra.mxu0 %v39
  %98 = vmatprep.subr.mxu0 %v43
  %99 = vmatpush1.msra.mxu0 %v42
  %100 = vmatprep.subr.mxu0 %v46
  %101 = vmatpush1.msra.mxu0 %v45
  %102 = vmatprep.subr.mxu0 %v49
  %103 = vmatpush1.msra.mxu0 %v48
  %104 = vmatprep.subr.mxu0 %v52
  %105 = vmatpush1.msra.mxu0 %v51
  %106 = vmatprep.subr.mxu0 %v55
  %107 = vmatpush1.msra.mxu0 %v54
  %108 = vmatprep.subr.mxu0 %v58
  %109 = vmatpush1.msra.mxu0 %v57
  %110 = vmatprep.subr.mxu0 %v61
  %111 = vmatpush1.msra.mxu0 %v60
  %112 = vmatprep.subr.mxu0 0.0
  %113 = vmatpush1.msra.mxu0 0.0
  %114 = vmatprep.subr.mxu0 0.0
  %115 = vmatpush1.msra.mxu0 0.0
  %116 = vmatprep.subr.mxu0 0.0
  %117 = vmatpush1.msra.mxu0 0.0
  %118 = vmatprep.subr.mxu0 0.0
  %119 = vmatpush1.msra.mxu0 0.0
  %120 = vmatprep.subr.mxu0 0.0
  %121 = vmatpush1.msra.mxu0 0.0
  %122 = vmatprep.subr.mxu0 0.0
  %123 = vmatpush1.msra.mxu0 0.0
  %124 = vmatprep.subr.mxu0 0.0
  %125 = vmatpush1.msra.mxu0 0.0
  %126 = vmatprep.subr.mxu0 0.0
  %127 = vmatpush1.msra.mxu0 0.0
  %128 = vmatprep.subr.mxu0 0.0
  %129 = vmatpush1.msra.mxu0 0.0
  %130 = vmatprep.subr.mxu0 0.0
  %131 = vmatpush1.msra.mxu0 0.0
  %132 = vmatprep.subr.mxu0 0.0
  %133 = vmatpush1.msra.mxu0 0.0
  %134 = vmatprep.subr.mxu0 0.0
  %135 = vmatpush1.msra.mxu0 0.0
  %136 = vmatprep.subr.mxu0 0.0
  %137 = vmatpush1.msra.mxu0 0.0
  %138 = vmatprep.subr.mxu0 0.0
  %139 = vmatpush1.msra.mxu0 0.0
  %140 = vmatprep.subr.mxu0 0.0
  %141 = vmatpush1.msra.mxu0 0.0
  %142 = vmatprep.subr.mxu0 0.0
  %143 = vmatpush1.msra.mxu0 0.0
  %144 = vmatprep.mubr.f32.mxu0 0.0
  %145 = vmatmul.mubr.f32.gmra.mrb[0].mxu0 %v14
  %v146 = vpop.f32.mrb[0].mxu0
  %v147 = vadd.f32 %v68, %v146
  %v148 = vpop.f32.mrb[0].mxu0
  %v149 = vadd.f32 %v72, %v148
  %150 = vdwg.mxu0
  %151 = vmatprep.subr.mxu0 0.0
  %152 = vmatpush1.msra.mxu0 %v17
  %153 = vmatprep.subr.mxu0 0.0
  %154 = vmatpush1.msra.mxu0 %v20
  %155 = vmatprep.subr.mxu0 0.0
  %156 = vmatpush1.msra.mxu0 %v23
  %157 = vmatprep.subr.mxu0 0.0
  %158 = vmatpush1.msra.mxu0 %v26
  %159 = vmatprep.subr.mxu0 0.0
  %160 = vmatpush1.msra.mxu0 %v29
  %161 = vmatprep.subr.mxu0 0.0
  %162 = vmatpush1.msra.mxu0 %v32
  %163 = vmatprep.subr.mxu0 0.0
  %164 = vmatpush1.msra.mxu0 %v35
  %165 = vmatprep.subr.mxu0 0.0
  %166 = vmatpush1.msra.mxu0 %v38
  %167 = vmatprep.subr.mxu0 0.0
  %168 = vmatpush1.msra.mxu0 %v41
  %169 = vmatprep.subr.mxu0 0.0
  %170 = vmatpush1.msra.mxu0 %v44
  %171 = vmatprep.subr.mxu0 0.0
  %172 = vmatpush1.msra.mxu0 %v47
  %173 = vmatprep.subr.mxu0 0.0
  %174 = vmatpush1.msra.mxu0 %v50
  %175 = vmatprep.subr.mxu0 0.0
  %176 = vmatpush1.msra.mxu0 %v53
  %177 = vmatprep.subr.mxu0 0.0
  %178 = vmatpush1.msra.mxu0 %v56
  %179 = vmatprep.subr.mxu0 0.0
  %180 = vmatpush1.msra.mxu0 %v59
  %181 = vmatprep.subr.mxu0 0.0
  %182 = vmatpush1.msra.mxu0 %v62
  %183 = vmatprep.subr.mxu0 0.0
  %184 = vmatpush1.msra.mxu0 0.0
  %185 = vmatprep.subr.mxu0 0.0
  %186 = vmatpush1.msra.mxu0 0.0
  %187 = vmatprep.subr.mxu0 0.0
  %188 = vmatpush1.msra.mxu0 0.0
  %189 = vmatprep.subr.mxu0 0.0
  %190 = vmatpush1.msra.mxu0 0.0
  %191 = vmatprep.subr.mxu0 0.0
  %192 = vmatpush1.msra.mxu0 0.0
  %193 = vmatprep.subr.mxu0 0.0
  %194 = vmatpush1.msra.mxu0 0.0
  %195 = vmatprep.subr.mxu0 0.0
  %196 = vmatpush1.msra.mxu0 0.0
  %197 = vmatprep.subr.mxu0 0.0
  %198 = vmatpush1.msra.mxu0 0.0
  %199 = vmatprep.subr.mxu0 0.0
  %200 = vmatpush1.msra.mxu0 0.0
  %201 = vmatprep.subr.mxu0 0.0
  %202 = vmatpush1.msra.mxu0 0.0
  %203 = vmatprep.subr.mxu0 0.0
  %204 = vmatpush1.msra.mxu0 0.0
  %205 = vmatprep.subr.mxu0 0.0
  %206 = vmatpush1.msra.mxu0 0.0
  %207 = vmatprep.subr.mxu0 0.0
  %208 = vmatpush1.msra.mxu0 0.0
  %209 = vmatprep.subr.mxu0 0.0
  %210 = vmatpush1.msra.mxu0 0.0
  %211 = vmatprep.subr.mxu0 0.0
  %212 = vmatpush1.msra.mxu0 0.0
  %213 = vmatprep.subr.mxu0 0.0
  %214 = vmatpush1.msra.mxu0 0.0
  %215 = vmatprep.mubr.f32.mxu0 0.0
  %216 = vmatmul.mubr.f32.gmra.mrb[0].mxu0 %v14
  %v217 = vpop.f32.mrb[0].mxu0
  %v218 = vadd.f32 %v76, %v217
  %v219 = vpop.f32.mrb[0].mxu0
  %220 = vdwg.mxu0
  %v224 = vcombine.low %v147, %v149
  %v226 = vunpack.c.l.s4 1966171168
  %v227 = vunpack.c.0.s8 %v226
  %v228 = vlaneseq
  %v229 = vshrl.u32 %v228, 7
  %v230 = vsub.s32 %v227, %v229
  %v231 = vrot.slane %v224, %v230
  %v233 = vunpack.c.l.s4 1966171168
  %v234 = vunpack.c.0.s8 %v233
  %v235 = vlaneseq
  %v236 = vshrl.u32 %v235, 7
  %v237 = vsub.s32 %v234, %v236
  %v238 = vrot.slane %v218, %v237
  %v239 = vcombine.low %v231, %v238
  %v241 = vunpack.c.l.s4 1966171168
  %v242 = vunpack.c.0.s8 %v241
  %v243 = vlaneseq
  %v244 = vshrl.u32 %v243, 7
  %v245 = vsub.s32 %v242, %v244
  %v246 = vrot.slane %v239, %v245
  %v248 = vlaneseq
  %vm249 = vcmp.ge.s32.totalorder %v248, 0
  %vm250 = vcmp.lt.s32.totalorder %v248, 384
  %vm251 = vmand %vm249, %vm250
  %252 = vst.msk [vmem:[%s3] sm:$0x7] %vm251, %v246
  // Predicated region
  $region14: #{quantile_expansion.1} parent=0 // pred_check
    _
  $region15: #{quantile_expansion.1} parent=0 // pred_check_branch
    %254 = sbr.rel (0) target = $region17
  $region16: #{quantile_expansion.1} parent=0 // pred_region
    _
  $region17: #{quantile_expansion.1} parent=0 // pred_fallthru
    _
  // Predicated region
  $region18: #{quantile_expansion.1} parent=0 // pred_check
    _
  $region19: #{quantile_expansion.1} parent=0 // pred_check_branch
    %256 = sbr.rel (0) target = $region21
  $region20: #{quantile_expansion.1} parent=0 // pred_region
    _
  $region21: #{quantile_expansion.1} parent=0 // pred_fallthru
    _

</llo_original>
